<compile_context>
chip_gen: v7x
topology: tpu7x:2x2x1
jax: 0.10.0
libtpu: 0.0.40
codegen_flags: <defaults>
</compile_context>

<pallas_src>
import jax
import jax.numpy as jnp
from jax.experimental import pallas as pl
from jax.experimental.pallas import tpu as pltpu


def _norm_kernel(scale_ref, bias_ref, img_ref, o_ref):
    # img block: (TR, TC); scale/bias block: (TR, 1) f32 -> broadcast over lanes.
    x = img_ref[...].astype(jnp.float32)
    o_ref[...] = (x * scale_ref[...] + bias_ref[...]).astype(o_ref.dtype)


def _sublane_quantum(itemsize):
    # Sub-32-bit dtypes pack along sublanes: native row tile is 8/16/32.
    if itemsize >= 4:
        return 8
    if itemsize == 2:
        return 16
    return 32


def _default_block_bytes(device_kind):
    kind = device_kind.lower()
    if "v7" in kind:
        return 8 * 1024 * 1024   # 3.2 TB/s HBM: amortize per-step overhead
    if "v6" in kind:
        return 4 * 1024 * 1024   # ~86% of roofline plateau at 1-4 MiB
    if "v5" in kind:
        return 3 * 1024 * 1024
    return 4 * 1024 * 1024


def _choose_tiles(R, HW, itemsize, max_block_bytes, sub_q):
    """Pick (tile_rows, tile_cols): BlockSpec-legal, lane-dense, ~max_block_bytes."""
    min_rows = sub_q if R >= sub_q else R
    if min_rows * HW * itemsize <= max_block_bytes:
        # Full rows fit: keep the last dim the whole (lane-dense) row.
        tile_cols = HW
    else:
        # Must split columns: largest multiple of 128 within budget, preferring
        # one that divides HW so the last column tile is not a masked store.
        budget_cols = max(128, (max_block_bytes // (min_rows * itemsize)) // 128 * 128)
        budget_cols = min(budget_cols, HW)
        tile_cols = budget_cols
        if HW % 128 == 0:
            c = (budget_cols // 128) * 128
            while c >= 128 and HW % c != 0:
                c -= 128
            if c >= 128:
                tile_cols = c
    rows_fit = max(1, max_block_bytes // (tile_cols * itemsize))
    if rows_fit >= R:
        tile_rows = R
    else:
        tile_rows = max(sub_q, (rows_fit // sub_q) * sub_q)
    return tile_rows, tile_cols


def _ensure_two_parallel_steps(R, HW, tile_rows, tile_cols, sub_q):
    """Shrink a tile so the grid has >=2 steps (v7x has 2 TensorCores)."""
    if pl.cdiv(R, tile_rows) * pl.cdiv(HW, tile_cols) >= 2:
        return tile_rows, tile_cols
    # Prefer splitting rows (keeps the output lane-dense).
    if R >= 2 * sub_q:
        half = (R // 2 // sub_q) * sub_q
        if half >= sub_q:
            return half, tile_cols
    # Otherwise split columns into two lane-dense halves if possible.
    if tile_cols == HW and HW % 256 == 0:
        return tile_rows, HW // 2
    return tile_rows, tile_cols


def normalization(img, mean, std, *, max_block_bytes=None, donate_input=False):
    """img: (N, C, H, W); mean/std: (C, 1, 1) (or (C,)). Returns (img - mean) / std."""
    N, C, H, W = img.shape
    R, HW = N * C, H * W
    dtype = img.dtype
    itemsize = jnp.dtype(dtype).itemsize

    device_kind = jax.devices()[0].device_kind
    is_v7 = "v7" in device_kind.lower()
    if max_block_bytes is None:
        max_block_bytes = _default_block_bytes(device_kind)

    # Fold (x - mean) / std -> x * scale + bias; keep scale/bias in f32 so the
    # in-kernel FMA is done at full precision regardless of the image dtype.
    mean_f = mean.reshape(C).astype(jnp.float32)
    std_f = std.reshape(C).astype(jnp.float32)      # std == 0 -> inf/nan, same as reference
    scale_c = 1.0 / std_f
    bias_c = -mean_f / std_f
    # Row r of the flattened (N*C, H*W) image has channel r % C.
    scale_rows = jnp.tile(scale_c, N).reshape(R, 1)
    bias_rows = jnp.tile(bias_c, N).reshape(R, 1)

    img2 = img.reshape(R, HW)

    sub_q = _sublane_quantum(itemsize)
    tile_rows, tile_cols = _choose_tiles(R, HW, itemsize, max_block_bytes, sub_q)
    if is_v7:
        tile_rows, tile_cols = _ensure_two_parallel_steps(R, HW, tile_rows, tile_cols, sub_q)
    grid = (pl.cdiv(R, tile_rows), pl.cdiv(HW, tile_cols))

    # VMEM budget: double-buffered img in + img out (scale/bias are tiny).
    block_bytes = tile_rows * tile_cols * itemsize
    vmem_limit = min(max(4 * block_bytes + (2 << 20), 32 << 20), 48 << 20)

    total_bytes = 2 * R * HW * itemsize + 2 * R * 4
    cost = pl.CostEstimate(flops=2 * R * HW, transcendentals=0,
                           bytes_accessed=total_bytes)

    aliases = {2: 0} if donate_input else {}

    out2 = pl.pallas_call(
        _norm_kernel,
        out_shape=jax.ShapeDtypeStruct((R, HW), dtype),
        grid_spec=pltpu.PrefetchScalarGridSpec(
            num_scalar_prefetch=0,
            grid=grid,
            in_specs=[
                # scale/bias blocks are constant across the col axis -> resident
                # while the row tile is unchanged.
                pl.BlockSpec((tile_rows, 1), lambda i, j: (i, 0)),           # scale (f32)
                pl.BlockSpec((tile_rows, 1), lambda i, j: (i, 0)),           # bias  (f32)
                pl.BlockSpec((tile_rows, tile_cols), lambda i, j: (i, j)),   # img
            ],
            out_specs=pl.BlockSpec((tile_rows, tile_cols), lambda i, j: (i, j)),
        ),
        compiler_params=pltpu.CompilerParams(
            dimension_semantics=("parallel", "parallel"),
            vmem_limit_bytes=vmem_limit,
        ),
        cost_estimate=cost,
        input_output_aliases=aliases,
    )(scale_rows, bias_rows, img2)

    return out2.reshape(N, C, H, W)


if __name__ == "__main__":
    key = jax.random.PRNGKey(0)
    N, C, H, W = 2, 4, 16, 16

    k_img, k_mean, k_std = jax.random.split(key, 3)
    img = jax.random.normal(k_img, (N, C, H, W), dtype=jnp.float32)
    # Deterministic per-channel params (as the PyTorch module would get in __init__).
    mean = jax.random.normal(k_mean, (C,), dtype=jnp.float32).reshape(C, 1, 1)
    std = (jax.random.uniform(k_std, (C,), dtype=jnp.float32) + 0.5).reshape(C, 1, 1)

    out = normalization(img, mean, std)
    out = jax.block_until_ready(out)

    # Reference in plain JAX (same broadcasting semantics as PyTorch).
    ref = (img - mean[None]) / std[None]
    assert out.shape == img.shape and out.dtype == img.dtype
    assert jnp.allclose(out, ref, atol=1e-5, rtol=1e-5)

    print("KERNEL_OK")
</pallas_src>

<mosaic_0001>
module attributes {stable_mosaic.version = 11 : i64} {
  func.func @_norm_kernel(%arg0: i32, %arg1: i32, %arg2: memref<8x1xf32, #tpu.memory_space<vmem>>, %arg3: memref<8x1xf32, #tpu.memory_space<vmem>>, %arg4: memref<8x256xf32, #tpu.memory_space<vmem>>, %arg5: memref<8x256xf32, #tpu.memory_space<vmem>>) attributes {dimension_semantics = [#tpu.dimension_semantics<parallel>, #tpu.dimension_semantics<parallel>], iteration_bounds = array<i64: 1, 1>, scalar_prefetch = 0 : i64, scratch_operands = 0 : i64, tpu.core_type = #tpu.core_type<tc>, window_params = [{transform_indices = @transform_0, window_bounds = array<i64: 8, 1>}, {transform_indices = @transform_1, window_bounds = array<i64: 8, 1>}, {transform_indices = @transform_2, window_bounds = array<i64: 8, 256>}, {transform_indices = @transform_3, window_bounds = array<i64: 8, 256>}]} {
    %c0 = arith.constant 0 : index
    %c0_0 = arith.constant 0 : index
    %0 = vector.load %arg4[%c0, %c0_0] : memref<8x256xf32, #tpu.memory_space<vmem>>, vector<8x256xf32>
    %c0_1 = arith.constant 0 : index
    %c0_2 = arith.constant 0 : index
    %1 = vector.load %arg2[%c0_1, %c0_2] : memref<8x1xf32, #tpu.memory_space<vmem>>, vector<8x1xf32>
    %2 = vector.broadcast %1 : vector<8x1xf32> to vector<8x256xf32>
    %3 = arith.mulf %0, %2 : vector<8x256xf32>
    %c0_3 = arith.constant 0 : index
    %c0_4 = arith.constant 0 : index
    %4 = vector.load %arg3[%c0_3, %c0_4] : memref<8x1xf32, #tpu.memory_space<vmem>>, vector<8x1xf32>
    %5 = vector.broadcast %4 : vector<8x1xf32> to vector<8x256xf32>
    %6 = arith.addf %3, %5 : vector<8x256xf32>
    %c0_5 = arith.constant 0 : index
    %c0_6 = arith.constant 0 : index
    %7 = vector.load %arg5[%c0_5, %c0_6] : memref<8x256xf32, #tpu.memory_space<vmem>>, vector<8x256xf32>
    tpu.vector_store %arg5[%c0_5, %c0_6], %6 {strides = array<i32>} : memref<8x256xf32, #tpu.memory_space<vmem>>, vector<8x256xf32>,
    return
  }
  func.func @transform_0(%arg0: i32, %arg1: i32) -> (i32, i32) {
    %c0_i32 = arith.constant 0 : i32
    %c0_i32_0 = arith.constant 0 : i32
    return %arg0, %c0_i32 : i32, i32
  }
  func.func @transform_1(%arg0: i32, %arg1: i32) -> (i32, i32) {
    %c0_i32 = arith.constant 0 : i32
    %c0_i32_0 = arith.constant 0 : i32
    return %arg0, %c0_i32 : i32, i32
  }
  func.func @transform_2(%arg0: i32, %arg1: i32) -> (i32, i32) {
    %c0_i32 = arith.constant 0 : i32
    return %arg0, %arg1 : i32, i32
  }
  func.func @transform_3(%arg0: i32, %arg1: i32) -> (i32, i32) {
    %c0_i32 = arith.constant 0 : i32
    return %arg0, %arg1 : i32, i32
  }
}

</mosaic_0001>

<llo_original>
// kernel: tpu_custom_call.1
$region0: #{tpu_custom_call.1}
  #allocation0 [shape = 'u32[]', space=smem, size = 0x4, offset = 0x4, fixed_abs, tag = 'smem constant byte address 0x4 - core index']
  #allocation1 [shape = 'u32[144,128]{1,0:T(1,128)}', space=vmem, size = 0x12000, scoped, tag = 'internal scratch']
  %s0 = inlined_call_operand.vmem [shape: f32[8,1], index: 0, kind: input, shape index: {}]
  %s1 = inlined_call_operand.vmem [shape: f32[8,1], index: 1, kind: input, shape index: {}]
  %s2 = inlined_call_operand.vmem [shape: f32[8,256], index: 2, kind: input, shape index: {}]
  %s3 = inlined_call_operand.hbm [shape: f32[8,256], index: 3, kind: output, shape index: {}]
  %s4 = sld [smem:[#allocation0]]
  $region22: #{tpu_custom_call.1} parent=0
    _
  %s6 = ssub.s32 1, %s4
  %s7 = scalar_select 0, %s6, %s4
  $region1: #{tpu_custom_call.1} parent=0
    #allocation2 [shape = 'u8[8192]{0}', space=vmem, size = 0x2000, scoped, tag = 'output window, operand 0, single buffered']
    #allocation3 [shape = 's32[1]{0}', space=sflag, size = 0x4, scoped, tag = 'scoped memory for tpu_custom_call.1']
    %8 = vsyncpa [#allocation3], 0
    // Predicated region
    $region2: #{tpu_custom_call.1} parent=1 // pred_check
      _
    $region3: #{tpu_custom_call.1} parent=1 // pred_check_branch
      %10 = sbr.rel (0) target = $region5
    $region4: #{tpu_custom_call.1} parent=1 // pred_region
      _
    $region5: #{tpu_custom_call.1} parent=1 // pred_fallthru
      _
    // Predicated region
    $region6: #{tpu_custom_call.1} parent=1 // pred_check
      _
    $region7: #{tpu_custom_call.1} parent=1 // pred_check_branch
      %12 = sbr.rel (0) target = $region9
    $region8: #{tpu_custom_call.1} parent=1 // pred_region
      _
    $region9: #{tpu_custom_call.1} parent=1 // pred_fallthru
      _
    // Predicated region
    $region10: #{tpu_custom_call.1} parent=1 // pred_check
      _
    $region11: #{tpu_custom_call.1} parent=1 // pred_check_branch
      %14 = sbr.rel (0) target = $region13
    $region12: #{tpu_custom_call.1} parent=1 // pred_region
      _
    $region13: #{tpu_custom_call.1} parent=1 // pred_fallthru
      _
    %v15 = vld [vmem:[%s2] sm:$0xff]
    %v16 = vld [vmem:[%s2 + $0x8] sm:$0xff]
    %v17 = vld [vmem:[%s0] sm:$0xff]
    %19 = vset.pattern.permute.xlu0 0
    %20 = vperm.xlu0 %19, %v17
    %v21 = vpop.permute.xlu0 %20
    %v23 = vmul.f32 %v15, %v21
    %v24 = vmul.f32 %v16, %v21
    %v25 = vld [vmem:[%s1] sm:$0xff]
    %27 = vset.pattern.permute.xlu0 0
    %28 = vperm.xlu0 %27, %v25
    %v29 = vpop.permute.xlu0 %28
    %v31 = vadd.f32 %v23, %v29
    %v32 = vadd.f32 %v24, %v29
    %33 = vst [vmem:[#allocation2] sm:$0xff] %v31
    %34 = vst [vmem:[#allocation2 + $0x8] sm:$0xff] %v32
    // Predicated region
    $region14: #{tpu_custom_call.1} parent=1 // pred_check
      _
    $region15: #{tpu_custom_call.1} parent=1 // pred_check_branch
      %36 = sbr.rel (0) target = $region17
    $region16: #{tpu_custom_call.1} parent=1 // pred_region
      %s38 = ssub.s32 256, 256
      %39 = vsyncadd [#allocation3], %s38
      %s41 = sshll.u32 [#allocation2], 4
      %s42 = int_to_ptr.vmem [resolvable:$true] %s41
      %44 = dma.vmem_to_hbm [thread:$0]  %s42, 256, %s3, [#allocation3]
    $region17: #{tpu_custom_call.1} parent=1 // pred_fallthru
      _
    // Predicated region
    $region18: #{tpu_custom_call.1} parent=1 // pred_check
      _
    $region19: #{tpu_custom_call.1} parent=1 // pred_check_branch
      %46 = sbr.rel (0) target = $region21
    $region20: #{tpu_custom_call.1} parent=1 // pred_region
      %47 = dma.done [#allocation3], 256
    $region21: #{tpu_custom_call.1} parent=1 // pred_fallthru
      _
    %48 = vsyncpa [#allocation3], 1

</llo_original>
